<compile_context>
chip_gen: v7x
topology: tpu7x:2x2x1
jax: 0.10.0
libtpu: 0.0.40
codegen_flags: <defaults>
</compile_context>

<pallas_src>
import functools

import jax
import jax.numpy as jnp
from jax.experimental import pallas as pl
from jax.experimental.pallas import tpu as pltpu

NUM_CLASS = 8  # args['NUM_CLASS'] in the original module
_LANES = 128


def _ce_kernel(w_ref, x_ref, lab_ref, num_out, den_out, num_acc, den_acc, *,
               num_class, tile_s1, tiles_per_split, s_valid, needs_mask):
    """Weighted cross-entropy partial accumulation for one spatial tile.

    w_ref   : (C,)             f32 class weights (scalar-prefetched, SMEM)
    x_ref   : (1, C, TS1, 128) logits tile (input dtype; upcast per-class here)
    lab_ref : (1, TS1, 128)    int32 target class per position
    num_out : (1, 1, 1, 128)   f32 per-(batch,split) weighted-NLL partials
    den_out : (1, 1, 1, 128)   f32 per-(batch,split) weight partials
    num_acc : (TS1, 128)       f32 VMEM scratch accumulator
    den_acc : (TS1, 128)       f32 VMEM scratch accumulator
    """
    p = pl.program_id(1)  # spatial split index (parallel)
    j = pl.program_id(2)  # spatial tile index within the split (accumulation)

    @pl.when(j == 0)
    def _():
        num_acc[...] = jnp.zeros_like(num_acc)
        den_acc[...] = jnp.zeros_like(den_acc)

    lab = lab_ref[0]                       # (TS1, 128) int32

    # Pass 1: running max over classes + one-hot gather of the target logit
    # and its class weight.  C is a leading axis, so everything is elementwise
    # VPU work on (TS1, 128) planes; only one plane is live at a time.
    xc = x_ref[0, 0].astype(jnp.float32)
    sel = lab == 0
    m = xc
    x_t = jnp.where(sel, xc, 0.0)
    w_sel = jnp.where(sel, w_ref[0], 0.0)
    for c in range(1, num_class):          # static unrolled loop over C planes
        xc = x_ref[0, c].astype(jnp.float32)
        sel = lab == c
        m = jnp.maximum(m, xc)
        x_t = jnp.where(sel, xc, x_t)
        w_sel = jnp.where(sel, w_ref[c], w_sel)

    # Pass 2: sum of exponentials (re-reads each class plane from VMEM instead
    # of keeping a (C, TS1, 128) f32 temporary alive).
    sumexp = jnp.exp(x_ref[0, 0].astype(jnp.float32) - m)
    for c in range(1, num_class):
        sumexp = sumexp + jnp.exp(x_ref[0, c].astype(jnp.float32) - m)
    lse = m + jnp.log(sumexp)

    # Labels outside [0, C) (e.g. PyTorch's default ignore_index=-100, or the
    # -1 lane padding added by the wrapper) contribute 0 to both sums.
    nll = w_sel * (lse - x_t)

    if needs_mask:
        # Only emitted when the tiling over-covers H*W (lane padding or a
        # ragged last tile).  jnp.where (not a multiply) so garbage / NaN in
        # clipped edge rows never reaches the accumulators.
        tile = p * tiles_per_split + j     # global (unclamped) tile index
        sub = jax.lax.broadcasted_iota(jnp.int32, lab.shape, 0)
        lane = jax.lax.broadcasted_iota(jnp.int32, lab.shape, 1)
        pos = (tile * tile_s1 + sub) * _LANES + lane
        valid = pos < s_valid
        nll = jnp.where(valid, nll, 0.0)
        w_sel = jnp.where(valid, w_sel, 0.0)

    num_acc[...] += nll
    den_acc[...] += w_sel

    # Fused epilogue: reduce the (TS1, 128) accumulators to one lane-dense row
    # before writeback, so HBM output traffic is tiny.
    @pl.when(j == pl.num_programs(2) - 1)
    def _():
        num_out[0, 0] = jnp.sum(num_acc[...], axis=0, keepdims=True)
        den_out[0, 0] = jnp.sum(den_acc[...], axis=0, keepdims=True)


@functools.partial(jax.jit, static_argnames=("tile_s1",))
def cross_entropy_loss(logits_nchw, labels, loss_weight, *, tile_s1=1024):
    """Weighted mean CrossEntropyLoss matching the PyTorch module's forward.

    Note: like PyTorch's weighted-mean CE, a zero total selected weight yields
    NaN/Inf.
    """
    n, c, h, w = logits_nchw.shape
    assert c == loss_weight.shape[0]
    s = h * w
    s1 = pl.cdiv(s, _LANES)                         # spatial rows of 128 lanes

    # Free, contiguous reshapes -- no transpose.  Padding (a full extra HBM
    # pass) is only taken when H*W is not a multiple of 128.
    x = logits_nchw.reshape(n, c, s)
    y = labels.reshape(n, s).astype(jnp.int32)
    if s1 * _LANES != s:
        # TODO(synk): rare path (H*W % 128 != 0) still costs one pad copy;
        # padded labels are -1 so they contribute 0 even without the mask.
        pad = s1 * _LANES - s
        x = jnp.pad(x, ((0, 0), (0, 0), (0, pad)))
        y = jnp.pad(y, ((0, 0), (0, pad)), constant_values=-1)
    x = x.reshape(n, c, s1, _LANES)                 # keep HBM dtype (bf16 ok)
    y = y.reshape(n, s1, _LANES)
    w_vec = loss_weight.astype(jnp.float32).reshape(c)

    # Spatial tile: TS1 sublane rows of 128 lanes (~4 MiB f32 logits per step
    # at the default TS1=1024).
    ts1 = int(tile_s1)
    if s1 <= ts1:
        ts1 = s1                                    # single tile == full extent
    num_tiles = pl.cdiv(s1, ts1)

    # Second parallel axis so both v7x TensorCores stay busy when the batch
    # axis alone can't be split evenly (no effect on single-TC v5e/v6e).
    n_split = 2 if (n % 2 == 1 and num_tiles >= 2) else 1
    tps = pl.cdiv(num_tiles, n_split)               # tiles per split
    last_block = num_tiles - 1

    needs_mask = (n_split * tps * ts1 * _LANES) != s

    def x_map(i, p, j, _w):
        return (i, 0, jnp.minimum(p * tps + j, last_block), 0)

    def y_map(i, p, j, _w):
        return (i, jnp.minimum(p * tps + j, last_block), 0)

    kern = functools.partial(
        _ce_kernel, num_class=c, tile_s1=ts1, tiles_per_split=tps,
        s_valid=s, needs_mask=needs_mask)

    num, den = pl.pallas_call(
        kern,
        out_shape=(
            jax.ShapeDtypeStruct((n, n_split, 1, _LANES), jnp.float32),
            jax.ShapeDtypeStruct((n, n_split, 1, _LANES), jnp.float32),
        ),
        grid_spec=pltpu.PrefetchScalarGridSpec(
            num_scalar_prefetch=1,                  # class weights -> SMEM
            grid=(n, n_split, tps),
            in_specs=[
                # logits: lane-dense spatial tile, class axis leading
                pl.BlockSpec((1, c, ts1, _LANES), x_map),
                # labels
                pl.BlockSpec((1, ts1, _LANES), y_map),
            ],
            out_specs=[
                # one lane-dense partial row per (batch, split)
                pl.BlockSpec((1, 1, 1, _LANES), lambda i, p, j, _w: (i, p, 0, 0)),
                pl.BlockSpec((1, 1, 1, _LANES), lambda i, p, j, _w: (i, p, 0, 0)),
            ],
            scratch_shapes=[
                pltpu.VMEM((ts1, _LANES), jnp.float32),   # num accumulator
                pltpu.VMEM((ts1, _LANES), jnp.float32),   # den accumulator
            ],
        ),
        compiler_params=pltpu.CompilerParams(
            # batch & split axes parallel (megacore), spatial axis accumulates
            dimension_semantics=("parallel", "parallel", "arbitrary"),
            vmem_limit_bytes=48 * 1024 * 1024,
        ),
    )(w_vec, x, y)

    # Tiny final reduction of the per-(batch, split) lane partials.
    return (jnp.sum(num) / jnp.sum(den)).astype(jnp.float32)


def _reference_loss(logits_nchw, labels, loss_weight):
    n, c, h, w = logits_nchw.shape
    x = jnp.transpose(logits_nchw, (0, 2, 3, 1)).reshape(-1, c).astype(jnp.float32)
    y = labels.reshape(-1).astype(jnp.int32)
    logp = jax.nn.log_softmax(x, axis=-1)
    nll = -jnp.take_along_axis(logp, y[:, None], axis=-1)[:, 0]
    wi = loss_weight[y]
    return jnp.sum(wi * nll) / jnp.sum(wi)


if __name__ == "__main__":
    key = jax.random.PRNGKey(0)
    k1, k2 = jax.random.split(key)

    N, C, H, W = 2, NUM_CLASS, 16, 16
    logits = jax.random.normal(k1, (N, C, H, W), dtype=jnp.float32)
    labels = jax.random.randint(k2, (N, H, W), 0, C, dtype=jnp.int32)

    # Deterministic class weights (stand-in for the numpy `loss_weight`).
    loss_weight = 0.5 + 0.25 * jnp.arange(C, dtype=jnp.float32)

    loss = cross_entropy_loss(logits, labels, loss_weight)
    loss = jax.block_until_ready(loss)

    ref = _reference_loss(logits, labels, loss_weight)
    assert jnp.allclose(loss, ref, rtol=1e-5, atol=1e-5), (loss, ref)

    print("KERNEL_OK")
</pallas_src>

<mosaic_0001>
module attributes {stable_mosaic.version = 11 : i64} {
  func.func @_ce_kernel(%arg0: i32, %arg1: i32, %arg2: i32, %arg3: memref<8xf32, #tpu.memory_space<smem>>, %arg4: memref<1x8x2x128xf32, #tpu.memory_space<vmem>>, %arg5: memref<1x2x128xi32, #tpu.memory_space<vmem>>, %arg6: memref<1x1x1x128xf32, #tpu.memory_space<vmem>>, %arg7: memref<1x1x1x128xf32, #tpu.memory_space<vmem>>, %arg8: memref<2x128xf32, #tpu.memory_space<vmem>>, %arg9: memref<2x128xf32, #tpu.memory_space<vmem>>) attributes {dimension_semantics = [#tpu.dimension_semantics<parallel>, #tpu.dimension_semantics<parallel>, #tpu.dimension_semantics<arbitrary>], iteration_bounds = array<i64: 2, 1, 1>, scalar_prefetch = 1 : i64, scratch_operands = 2 : i64, tpu.core_type = #tpu.core_type<tc>, window_params = [{transform_indices = @transform_0, window_bounds = array<i64: 1, 8, 2, 128>}, {transform_indices = @transform_1, window_bounds = array<i64: 1, 2, 128>}, {transform_indices = @transform_2, window_bounds = array<i64: 1, 1, 1, 128>}, {transform_indices = @transform_3, window_bounds = array<i64: 1, 1, 1, 128>}]} {
    %c0_i32 = arith.constant 0 : i32
    %0 = arith.cmpi eq, %arg2, %c0_i32 : i32
    %1 = arith.extui %0 : i1 to i32
    %c0_i32_0 = arith.constant 0 : i32
    %2 = arith.cmpi ne, %1, %c0_i32_0 : i32
    scf.if %2 {
      %cst_80 = arith.constant 0.000000e+00 : f32
      %130 = vector.broadcast %cst_80 : f32 to vector<2x128xf32>
      %c0_81 = arith.constant 0 : index
      %c0_82 = arith.constant 0 : index
      %131 = vector.load %arg8[%c0_81, %c0_82] : memref<2x128xf32, #tpu.memory_space<vmem>>, vector<2x128xf32>
      tpu.vector_store %arg8[%c0_81, %c0_82], %130 {strides = array<i32>} : memref<2x128xf32, #tpu.memory_space<vmem>>, vector<2x128xf32>,
      %cst_83 = arith.constant 0.000000e+00 : f32
      %132 = vector.broadcast %cst_83 : f32 to vector<2x128xf32>
      %c0_84 = arith.constant 0 : index
      %c0_85 = arith.constant 0 : index
      %133 = vector.load %arg9[%c0_84, %c0_85] : memref<2x128xf32, #tpu.memory_space<vmem>>, vector<2x128xf32>
      tpu.vector_store %arg9[%c0_84, %c0_85], %132 {strides = array<i32>} : memref<2x128xf32, #tpu.memory_space<vmem>>, vector<2x128xf32>,
    } else {
    }
    %c0 = arith.constant 0 : index
    %c0_1 = arith.constant 0 : index
    %c0_2 = arith.constant 0 : index
    %3 = vector.load %arg5[%c0, %c0_1, %c0_2] : memref<1x2x128xi32, #tpu.memory_space<vmem>>, vector<1x2x128xi32>
    %4 = vector.shape_cast %3 : vector<1x2x128xi32> to vector<2x128xi32>
    %c0_3 = arith.constant 0 : index
    %c0_4 = arith.constant 0 : index
    %c0_5 = arith.constant 0 : index
    %c0_6 = arith.constant 0 : index
    %5 = vector.load %arg4[%c0_3, %c0_4, %c0_5, %c0_6] : memref<1x8x2x128xf32, #tpu.memory_space<vmem>>, vector<1x1x2x128xf32>
    %6 = vector.shape_cast %5 : vector<1x1x2x128xf32> to vector<2x128xf32>
    %c0_i32_7 = arith.constant 0 : i32
    %7 = vector.broadcast %c0_i32_7 : i32 to vector<2x128xi32>
    %8 = arith.cmpi eq, %4, %7 : vector<2x128xi32>
    %cst = arith.constant 0.000000e+00 : f32
    %9 = vector.broadcast %cst : f32 to vector<2x128xf32>
    %10 = arith.select %8, %6, %9 : vector<2x128xi1>, vector<2x128xf32>
    %c0_8 = arith.constant 0 : index
    %11 = memref.load %arg3[%c0_8] : memref<8xf32, #tpu.memory_space<smem>>
    %cst_9 = arith.constant 0.000000e+00 : f32
    %12 = vector.broadcast %11 : f32 to vector<2x128xf32>
    %13 = vector.broadcast %cst_9 : f32 to vector<2x128xf32>
    %14 = arith.select %8, %12, %13 : vector<2x128xi1>, vector<2x128xf32>
    %c0_10 = arith.constant 0 : index
    %c1 = arith.constant 1 : index
    %c0_11 = arith.constant 0 : index
    %c0_12 = arith.constant 0 : index
    %15 = vector.load %arg4[%c0_10, %c1, %c0_11, %c0_12] : memref<1x8x2x128xf32, #tpu.memory_space<vmem>>, vector<1x1x2x128xf32>
    %16 = vector.shape_cast %15 : vector<1x1x2x128xf32> to vector<2x128xf32>
    %c1_i32 = arith.constant 1 : i32
    %17 = vector.broadcast %c1_i32 : i32 to vector<2x128xi32>
    %18 = arith.cmpi eq, %4, %17 : vector<2x128xi32>
    %19 = arith.maximumf %6, %16 : vector<2x128xf32>
    %20 = arith.select %18, %16, %10 : vector<2x128xi1>, vector<2x128xf32>
    %c1_13 = arith.constant 1 : index
    %21 = memref.load %arg3[%c1_13] : memref<8xf32, #tpu.memory_space<smem>>
    %22 = vector.broadcast %21 : f32 to vector<2x128xf32>
    %23 = arith.select %18, %22, %14 : vector<2x128xi1>, vector<2x128xf32>
    %c0_14 = arith.constant 0 : index
    %c2 = arith.constant 2 : index
    %c0_15 = arith.constant 0 : index
    %c0_16 = arith.constant 0 : index
    %24 = vector.load %arg4[%c0_14, %c2, %c0_15, %c0_16] : memref<1x8x2x128xf32, #tpu.memory_space<vmem>>, vector<1x1x2x128xf32>
    %25 = vector.shape_cast %24 : vector<1x1x2x128xf32> to vector<2x128xf32>
    %c2_i32 = arith.constant 2 : i32
    %26 = vector.broadcast %c2_i32 : i32 to vector<2x128xi32>
    %27 = arith.cmpi eq, %4, %26 : vector<2x128xi32>
    %28 = arith.maximumf %19, %25 : vector<2x128xf32>
    %29 = arith.select %27, %25, %20 : vector<2x128xi1>, vector<2x128xf32>
    %c2_17 = arith.constant 2 : index
    %30 = memref.load %arg3[%c2_17] : memref<8xf32, #tpu.memory_space<smem>>
    %31 = vector.broadcast %30 : f32 to vector<2x128xf32>
    %32 = arith.select %27, %31, %23 : vector<2x128xi1>, vector<2x128xf32>
    %c0_18 = arith.constant 0 : index
    %c3 = arith.constant 3 : index
    %c0_19 = arith.constant 0 : index
    %c0_20 = arith.constant 0 : index
    %33 = vector.load %arg4[%c0_18, %c3, %c0_19, %c0_20] : memref<1x8x2x128xf32, #tpu.memory_space<vmem>>, vector<1x1x2x128xf32>
    %34 = vector.shape_cast %33 : vector<1x1x2x128xf32> to vector<2x128xf32>
    %c3_i32 = arith.constant 3 : i32
    %35 = vector.broadcast %c3_i32 : i32 to vector<2x128xi32>
    %36 = arith.cmpi eq, %4, %35 : vector<2x128xi32>
    %37 = arith.maximumf %28, %34 : vector<2x128xf32>
    %38 = arith.select %36, %34, %29 : vector<2x128xi1>, vector<2x128xf32>
    %c3_21 = arith.constant 3 : index
    %39 = memref.load %arg3[%c3_21] : memref<8xf32, #tpu.memory_space<smem>>
    %40 = vector.broadcast %39 : f32 to vector<2x128xf32>
    %41 = arith.select %36, %40, %32 : vector<2x128xi1>, vector<2x128xf32>
    %c0_22 = arith.constant 0 : index
    %c4 = arith.constant 4 : index
    %c0_23 = arith.constant 0 : index
    %c0_24 = arith.constant 0 : index
    %42 = vector.load %arg4[%c0_22, %c4, %c0_23, %c0_24] : memref<1x8x2x128xf32, #tpu.memory_space<vmem>>, vector<1x1x2x128xf32>
    %43 = vector.shape_cast %42 : vector<1x1x2x128xf32> to vector<2x128xf32>
    %c4_i32 = arith.constant 4 : i32
    %44 = vector.broadcast %c4_i32 : i32 to vector<2x128xi32>
    %45 = arith.cmpi eq, %4, %44 : vector<2x128xi32>
    %46 = arith.maximumf %37, %43 : vector<2x128xf32>
    %47 = arith.select %45, %43, %38 : vector<2x128xi1>, vector<2x128xf32>
    %c4_25 = arith.constant 4 : index
    %48 = memref.load %arg3[%c4_25] : memref<8xf32, #tpu.memory_space<smem>>
    %49 = vector.broadcast %48 : f32 to vector<2x128xf32>
    %50 = arith.select %45, %49, %41 : vector<2x128xi1>, vector<2x128xf32>
    %c0_26 = arith.constant 0 : index
    %c5 = arith.constant 5 : index
    %c0_27 = arith.constant 0 : index
    %c0_28 = arith.constant 0 : index
    %51 = vector.load %arg4[%c0_26, %c5, %c0_27, %c0_28] : memref<1x8x2x128xf32, #tpu.memory_space<vmem>>, vector<1x1x2x128xf32>
    %52 = vector.shape_cast %51 : vector<1x1x2x128xf32> to vector<2x128xf32>
    %c5_i32 = arith.constant 5 : i32
    %53 = vector.broadcast %c5_i32 : i32 to vector<2x128xi32>
    %54 = arith.cmpi eq, %4, %53 : vector<2x128xi32>
    %55 = arith.maximumf %46, %52 : vector<2x128xf32>
    %56 = arith.select %54, %52, %47 : vector<2x128xi1>, vector<2x128xf32>
    %c5_29 = arith.constant 5 : index
    %57 = memref.load %arg3[%c5_29] : memref<8xf32, #tpu.memory_space<smem>>
    %58 = vector.broadcast %57 : f32 to vector<2x128xf32>
    %59 = arith.select %54, %58, %50 : vector<2x128xi1>, vector<2x128xf32>
    %c0_30 = arith.constant 0 : index
    %c6 = arith.constant 6 : index
    %c0_31 = arith.constant 0 : index
    %c0_32 = arith.constant 0 : index
    %60 = vector.load %arg4[%c0_30, %c6, %c0_31, %c0_32] : memref<1x8x2x128xf32, #tpu.memory_space<vmem>>, vector<1x1x2x128xf32>
    %61 = vector.shape_cast %60 : vector<1x1x2x128xf32> to vector<2x128xf32>
    %c6_i32 = arith.constant 6 : i32
    %62 = vector.broadcast %c6_i32 : i32 to vector<2x128xi32>
    %63 = arith.cmpi eq, %4, %62 : vector<2x128xi32>
    %64 = arith.maximumf %55, %61 : vector<2x128xf32>
    %65 = arith.select %63, %61, %56 : vector<2x128xi1>, vector<2x128xf32>
    %c6_33 = arith.constant 6 : index
    %66 = memref.load %arg3[%c6_33] : memref<8xf32, #tpu.memory_space<smem>>
    %67 = vector.broadcast %66 : f32 to vector<2x128xf32>
    %68 = arith.select %63, %67, %59 : vector<2x128xi1>, vector<2x128xf32>
    %c0_34 = arith.constant 0 : index
    %c7 = arith.constant 7 : index
    %c0_35 = arith.constant 0 : index
    %c0_36 = arith.constant 0 : index
    %69 = vector.load %arg4[%c0_34, %c7, %c0_35, %c0_36] : memref<1x8x2x128xf32, #tpu.memory_space<vmem>>, vector<1x1x2x128xf32>
    %70 = vector.shape_cast %69 : vector<1x1x2x128xf32> to vector<2x128xf32>
    %c7_i32 = arith.constant 7 : i32
    %71 = vector.broadcast %c7_i32 : i32 to vector<2x128xi32>
    %72 = arith.cmpi eq, %4, %71 : vector<2x128xi32>
    %73 = arith.maximumf %64, %70 : vector<2x128xf32>
    %74 = arith.select %72, %70, %65 : vector<2x128xi1>, vector<2x128xf32>
    %c7_37 = arith.constant 7 : index
    %75 = memref.load %arg3[%c7_37] : memref<8xf32, #tpu.memory_space<smem>>
    %76 = vector.broadcast %75 : f32 to vector<2x128xf32>
    %77 = arith.select %72, %76, %68 : vector<2x128xi1>, vector<2x128xf32>
    %c0_38 = arith.constant 0 : index
    %c0_39 = arith.constant 0 : index
    %c0_40 = arith.constant 0 : index
    %c0_41 = arith.constant 0 : index
    %78 = vector.load %arg4[%c0_38, %c0_39, %c0_40, %c0_41] : memref<1x8x2x128xf32, #tpu.memory_space<vmem>>, vector<1x1x2x128xf32>
    %79 = vector.shape_cast %78 : vector<1x1x2x128xf32> to vector<2x128xf32>
    %80 = arith.subf %79, %73 : vector<2x128xf32>
    %81 = math.exp %80 : vector<2x128xf32>
    %c0_42 = arith.constant 0 : index
    %c1_43 = arith.constant 1 : index
    %c0_44 = arith.constant 0 : index
    %c0_45 = arith.constant 0 : index
    %82 = vector.load %arg4[%c0_42, %c1_43, %c0_44, %c0_45] : memref<1x8x2x128xf32, #tpu.memory_space<vmem>>, vector<1x1x2x128xf32>
    %83 = vector.shape_cast %82 : vector<1x1x2x128xf32> to vector<2x128xf32>
    %84 = arith.subf %83, %73 : vector<2x128xf32>
    %85 = math.exp %84 : vector<2x128xf32>
    %86 = arith.addf %81, %85 : vector<2x128xf32>
    %c0_46 = arith.constant 0 : index
    %c2_47 = arith.constant 2 : index
    %c0_48 = arith.constant 0 : index
    %c0_49 = arith.constant 0 : index
    %87 = vector.load %arg4[%c0_46, %c2_47, %c0_48, %c0_49] : memref<1x8x2x128xf32, #tpu.memory_space<vmem>>, vector<1x1x2x128xf32>
    %88 = vector.shape_cast %87 : vector<1x1x2x128xf32> to vector<2x128xf32>
    %89 = arith.subf %88, %73 : vector<2x128xf32>
    %90 = math.exp %89 : vector<2x128xf32>
    %91 = arith.addf %86, %90 : vector<2x128xf32>
    %c0_50 = arith.constant 0 : index
    %c3_51 = arith.constant 3 : index
    %c0_52 = arith.constant 0 : index
    %c0_53 = arith.constant 0 : index
    %92 = vector.load %arg4[%c0_50, %c3_51, %c0_52, %c0_53] : memref<1x8x2x128xf32, #tpu.memory_space<vmem>>, vector<1x1x2x128xf32>
    %93 = vector.shape_cast %92 : vector<1x1x2x128xf32> to vector<2x128xf32>
    %94 = arith.subf %93, %73 : vector<2x128xf32>
    %95 = math.exp %94 : vector<2x128xf32>
    %96 = arith.addf %91, %95 : vector<2x128xf32>
    %c0_54 = arith.constant 0 : index
    %c4_55 = arith.constant 4 : index
    %c0_56 = arith.constant 0 : index
    %c0_57 = arith.constant 0 : index
    %97 = vector.load %arg4[%c0_54, %c4_55, %c0_56, %c0_57] : memref<1x8x2x128xf32, #tpu.memory_space<vmem>>, vector<1x1x2x128xf32>
    %98 = vector.shape_cast %97 : vector<1x1x2x128xf32> to vector<2x128xf32>
    %99 = arith.subf %98, %73 : vector<2x128xf32>
    %100 = math.exp %99 : vector<2x128xf32>
    %101 = arith.addf %96, %100 : vector<2x128xf32>
    %c0_58 = arith.constant 0 : index
    %c5_59 = arith.constant 5 : index
    %c0_60 = arith.constant 0 : index
    %c0_61 = arith.constant 0 : index
    %102 = vector.load %arg4[%c0_58, %c5_59, %c0_60, %c0_61] : memref<1x8x2x128xf32, #tpu.memory_space<vmem>>, vector<1x1x2x128xf32>
    %103 = vector.shape_cast %102 : vector<1x1x2x128xf32> to vector<2x128xf32>
    %104 = arith.subf %103, %73 : vector<2x128xf32>
    %105 = math.exp %104 : vector<2x128xf32>
    %106 = arith.addf %101, %105 : vector<2x128xf32>
    %c0_62 = arith.constant 0 : index
    %c6_63 = arith.constant 6 : index
    %c0_64 = arith.constant 0 : index
    %c0_65 = arith.constant 0 : index
    %107 = vector.load %arg4[%c0_62, %c6_63, %c0_64, %c0_65] : memref<1x8x2x128xf32, #tpu.memory_space<vmem>>, vector<1x1x2x128xf32>
    %108 = vector.shape_cast %107 : vector<1x1x2x128xf32> to vector<2x128xf32>
    %109 = arith.subf %108, %73 : vector<2x128xf32>
    %110 = math.exp %109 : vector<2x128xf32>
    %111 = arith.addf %106, %110 : vector<2x128xf32>
    %c0_66 = arith.constant 0 : index
    %c7_67 = arith.constant 7 : index
    %c0_68 = arith.constant 0 : index
    %c0_69 = arith.constant 0 : index
    %112 = vector.load %arg4[%c0_66, %c7_67, %c0_68, %c0_69] : memref<1x8x2x128xf32, #tpu.memory_space<vmem>>, vector<1x1x2x128xf32>
    %113 = vector.shape_cast %112 : vector<1x1x2x128xf32> to vector<2x128xf32>
    %114 = arith.subf %113, %73 : vector<2x128xf32>
    %115 = math.exp %114 : vector<2x128xf32>
    %116 = arith.addf %111, %115 : vector<2x128xf32>
    %117 = math.log %116 : vector<2x128xf32>
    %118 = arith.addf %73, %117 : vector<2x128xf32>
    %119 = arith.subf %118, %74 : vector<2x128xf32>
    %120 = arith.mulf %77, %119 : vector<2x128xf32>
    %c0_70 = arith.constant 0 : index
    %c0_71 = arith.constant 0 : index
    %121 = vector.load %arg8[%c0_70, %c0_71] : memref<2x128xf32, #tpu.memory_space<vmem>>, vector<2x128xf32>
    %122 = arith.addf %121, %120 : vector<2x128xf32>
    %c0_72 = arith.constant 0 : index
    %c0_73 = arith.constant 0 : index
    %123 = vector.load %arg8[%c0_72, %c0_73] : memref<2x128xf32, #tpu.memory_space<vmem>>, vector<2x128xf32>
    tpu.vector_store %arg8[%c0_72, %c0_73], %122 {strides = array<i32>} : memref<2x128xf32, #tpu.memory_space<vmem>>, vector<2x128xf32>,
    %c0_74 = arith.constant 0 : index
    %c0_75 = arith.constant 0 : index
    %124 = vector.load %arg9[%c0_74, %c0_75] : memref<2x128xf32, #tpu.memory_space<vmem>>, vector<2x128xf32>
    %125 = arith.addf %124, %77 : vector<2x128xf32>
    %c0_76 = arith.constant 0 : index
    %c0_77 = arith.constant 0 : index
    %126 = vector.load %arg9[%c0_76, %c0_77] : memref<2x128xf32, #tpu.memory_space<vmem>>, vector<2x128xf32>
    tpu.vector_store %arg9[%c0_76, %c0_77], %125 {strides = array<i32>} : memref<2x128xf32, #tpu.memory_space<vmem>>, vector<2x128xf32>,
    %c0_i32_78 = arith.constant 0 : i32
    %127 = arith.cmpi eq, %arg2, %c0_i32_78 : i32
    %128 = arith.extui %127 : i1 to i32
    %c0_i32_79 = arith.constant 0 : i32
    %129 = arith.cmpi ne, %128, %c0_i32_79 : i32
    scf.if %129 {
      %c0_80 = arith.constant 0 : index
      %c0_81 = arith.constant 0 : index
      %130 = vector.load %arg8[%c0_80, %c0_81] : memref<2x128xf32, #tpu.memory_space<vmem>>, vector<2x128xf32>
      %cst_82 = arith.constant dense<0.000000e+00> : vector<128xf32>
      %131 = vector.multi_reduction <add>, %130, %cst_82 [0] : vector<2x128xf32> to vector<128xf32>
      %132 = vector.shape_cast %131 : vector<128xf32> to vector<1x128xf32>
      %c0_83 = arith.constant 0 : index
      %c0_84 = arith.constant 0 : index
      %c0_85 = arith.constant 0 : index
      %c0_86 = arith.constant 0 : index
      %133 = vector.load %arg6[%c0_83, %c0_84, %c0_85, %c0_86] : memref<1x1x1x128xf32, #tpu.memory_space<vmem>>, vector<1x1x1x128xf32>
      %134 = vector.shape_cast %133 : vector<1x1x1x128xf32> to vector<1x128xf32>
      %135 = vector.shape_cast %132 : vector<1x128xf32> to vector<1x1x1x128xf32>
      tpu.vector_store %arg6[%c0_83, %c0_84, %c0_85, %c0_86], %135 {strides = array<i32>} : memref<1x1x1x128xf32, #tpu.memory_space<vmem>>, vector<1x1x1x128xf32>,
      %c0_87 = arith.constant 0 : index
      %c0_88 = arith.constant 0 : index
      %136 = vector.load %arg9[%c0_87, %c0_88] : memref<2x128xf32, #tpu.memory_space<vmem>>, vector<2x128xf32>
      %cst_89 = arith.constant dense<0.000000e+00> : vector<128xf32>
      %137 = vector.multi_reduction <add>, %136, %cst_89 [0] : vector<2x128xf32> to vector<128xf32>
      %138 = vector.shape_cast %137 : vector<128xf32> to vector<1x128xf32>
      %c0_90 = arith.constant 0 : index
      %c0_91 = arith.constant 0 : index
      %c0_92 = arith.constant 0 : index
      %c0_93 = arith.constant 0 : index
      %139 = vector.load %arg7[%c0_90, %c0_91, %c0_92, %c0_93] : memref<1x1x1x128xf32, #tpu.memory_space<vmem>>, vector<1x1x1x128xf32>
      %140 = vector.shape_cast %139 : vector<1x1x1x128xf32> to vector<1x128xf32>
      %141 = vector.shape_cast %138 : vector<1x128xf32> to vector<1x1x1x128xf32>
      tpu.vector_store %arg7[%c0_90, %c0_91, %c0_92, %c0_93], %141 {strides = array<i32>} : memref<1x1x1x128xf32, #tpu.memory_space<vmem>>, vector<1x1x1x128xf32>,
    } else {
    }
    return
  }
  func.func @transform_0(%arg0: i32, %arg1: i32, %arg2: i32, %arg3: memref<8xf32, #tpu.memory_space<smem>>) -> (i32, i32, i32, i32) {
    %c1_i32 = arith.constant 1 : i32
    %0 = arith.muli %arg1, %c1_i32 : i32
    %1 = arith.addi %0, %arg2 : i32
    %c0_i32 = arith.constant 0 : i32
    %2 = arith.minsi %1, %c0_i32 : i32
    %c0_i32_0 = arith.constant 0 : i32
    %c0_i32_1 = arith.constant 0 : i32
    %c0_i32_2 = arith.constant 0 : i32
    return %arg0, %c0_i32_0, %2, %c0_i32_1 : i32, i32, i32, i32
  }
  func.func @transform_1(%arg0: i32, %arg1: i32, %arg2: i32, %arg3: memref<8xf32, #tpu.memory_space<smem>>) -> (i32, i32, i32) {
    %c1_i32 = arith.constant 1 : i32
    %0 = arith.muli %arg1, %c1_i32 : i32
    %1 = arith.addi %0, %arg2 : i32
    %c0_i32 = arith.constant 0 : i32
    %2 = arith.minsi %1, %c0_i32 : i32
    %c0_i32_0 = arith.constant 0 : i32
    %c0_i32_1 = arith.constant 0 : i32
    return %arg0, %2, %c0_i32_0 : i32, i32, i32
  }
  func.func @transform_2(%arg0: i32, %arg1: i32, %arg2: i32, %arg3: memref<8xf32, #tpu.memory_space<smem>>) -> (i32, i32, i32, i32) {
    %c0_i32 = arith.constant 0 : i32
    %c0_i32_0 = arith.constant 0 : i32
    %c0_i32_1 = arith.constant 0 : i32
    return %arg0, %arg1, %c0_i32, %c0_i32_0 : i32, i32, i32, i32
  }
  func.func @transform_3(%arg0: i32, %arg1: i32, %arg2: i32, %arg3: memref<8xf32, #tpu.memory_space<smem>>) -> (i32, i32, i32, i32) {
    %c0_i32 = arith.constant 0 : i32
    %c0_i32_0 = arith.constant 0 : i32
    %c0_i32_1 = arith.constant 0 : i32
    return %arg0, %arg1, %c0_i32, %c0_i32_0 : i32, i32, i32, i32
  }
}

</mosaic_0001>

<llo_original>
// kernel: cross_entropy_loss.1
$region0: #{cross_entropy_loss.1}
  #allocation0 [shape = 'u32[]', space=smem, size = 0x4, offset = 0x4, fixed_abs, tag = 'smem constant byte address 0x4 - core index']
  #allocation1 [shape = 'u32[144,128]{1,0:T(1,128)}', space=vmem, size = 0x12000, scoped, tag = 'internal scratch']
  #allocation2 [shape = 'f32[2,128]{1,0:T(2,128)}', space=vmem, size = 0x400, scoped, tag = 'scratch operand']
  #allocation3 [shape = 'f32[2,128]{1,0:T(2,128)}', space=vmem, size = 0x400, scoped, tag = 'scratch operand']
  #allocation4 [shape = 's32[1]{0}', space=sflag, size = 0x4, scoped, tag = 'scoped memory for cross_entropy_loss.1']
  #allocation5 [shape = 'u8[512]{0}', space=smem, size = 0x200, scoped, tag = 'prefetched SMEM operand 0']
  %s0 = inlined_call_operand.vmem [shape: f32[8], index: 0, kind: input, shape index: {}]
  %s1 = inlined_call_operand.vmem [shape: f32[2,8,2,128], index: 1, kind: input, shape index: {}]
  %s2 = inlined_call_operand.vmem [shape: s32[2,2,128], index: 2, kind: input, shape index: {}]
  %s3 = inlined_call_operand.vmem [shape: f32[2,1,1,128], index: 3, kind: output, shape index: {0}]
  %s4 = inlined_call_operand.vmem [shape: f32[2,1,1,128], index: 4, kind: output, shape index: {1}]
  %5 = xla_tuple %s3, %s4
  %s6 = sld [smem:[#allocation0]]
  $region57: #{cross_entropy_loss.1} parent=0
    _
  %s8 = ssub.s32 1, %s6
  %s9 = scalar_select 0, %s8, %s6
  %s10 = sshll.u32 %s0, 4
  %s11 = int_to_ptr.vmem [resolvable:$true] %s10
  %13 = dma.vmem_to_smem %s11, 16, [#allocation5], [#allocation4]
  %14 = dma.done [#allocation4], 16
  %15 = sfence
  loop: start=0, step=1, limit=4
  $region2: #{cross_entropy_loss.1} parent=0 // loop_pre_header
    _
  $region3: #{cross_entropy_loss.1} parent=0 // loop_header
    %s17 = sphi 0, %s21
    %p18 = scmp.ge.s32.totalorder %s17, 4
    %s24 = sphi 0, %s43
    %s25 = sphi 0, %s39
    %s26 = sphi 0, %s35
    %s27 = sphi 0, %s24
    %s28 = sphi 0, %s25
    %s29 = sphi 0, %s26
    %s30 = sphi 0, %s27
    %s31 = sphi 0, %s28
    %s32 = sphi 0, %s29
    %s54 = sphi 0, %s56
    %s57 = sphi 0, %s54
    %s58 = sphi 0, %s57
    %s74 = sphi 0, %s58
    %s88 = sphi 0, %s90
    %s91 = sphi 0, %s88
    %s92 = sphi 0, %s91
    %s108 = sphi 0, %s92
    %s116 = sphi 0, %s118
    %s119 = sphi 0, %s116
    %s120 = sphi 0, %s119
    %s136 = sphi 0, %s120
    %s144 = sphi 0, %s146
    %s147 = sphi 0, %s144
    %s148 = sphi 0, %s147
    %s164 = sphi 0, %s148
  $region4: #{cross_entropy_loss.1} parent=0 // loop_header_branch
    %20 = sbr.rel (%p18) target = $region8
  $region5: #{cross_entropy_loss.1} parent=0 // loop_body
    %s22 = ssub.s32 %s17, 1
    %s23 = ssub.s32 %s17, 2
    %s33 = sadd.s32 1, %s26
    %p34 = scmp.ge.s32.totalorder %s33, 1
    %s35 = scalar_select %p34, 0, %s33
    %s36 = sadd.s32 1, %s25
    %s37 = scalar_select %p34, %s36, %s25
    %p38 = scmp.ge.s32.totalorder %s37, 1
    %s39 = scalar_select %p38, 0, %s37
    %s40 = sadd.s32 1, %s24
    %s41 = scalar_select %p38, %s40, %s24
    %p42 = scmp.ge.s32.totalorder %s41, 2
    %s43 = scalar_select %p42, 0, %s41
    %s44 = sadd.s32 %s25, %s26
    %p45 = scmp.lt.s32.totalorder %s44, 0
    %s46 = scalar_select %p45, %s44, 0
    %s47 = sadd.s32 %s39, %s35
    %p48 = scmp.lt.s32.totalorder %s47, 0
    %s49 = scalar_select %p48, %s47, 0
    %s50 = ssub.s32 %s24, %s43
    %s51 = ssub.s32 %s46, %s49
    %s52 = sor.u32 %s50, %s51
    %p53 = scmp.eq.s32.totalorder %s52, 0
    %s55 = sadd.s32 %s54, 1
    %s56 = scalar_select %p53, %s54, %s55
    %p59 = pneg %p53
    %p60 = scmp.eq.s32.totalorder %s17, 1
    %p61 = por %p59, %p60
    %p62 = scmp.ne.s32.totalorder %s54, %s57
    %p63 = scmp.eq.s32.totalorder %s17, 0
    %p64 = por %p62, %p63
    %p65 = scmp.ne.s32.totalorder %s54, %s57
    %p66 = scmp.eq.s32.totalorder %s22, 1
    %p67 = por %p65, %p66
    %p68 = scmp.ne.s32.totalorder %s57, %s58
    %p69 = scmp.eq.s32.totalorder %s22, 0
    %p70 = por %p68, %p69
    %p71 = scmp.ne.s32.totalorder %s57, %s58
    %p72 = scmp.eq.s32.totalorder %s23, 1
    %p73 = por %p71, %p72
    %p75 = scmp.ne.s32.totalorder %s58, %s74
    %p76 = scmp.eq.s32.totalorder %s23, 0
    %p77 = por %p75, %p76
    %s78 = sadd.s32 %s25, %s26
    %p79 = scmp.lt.s32.totalorder %s78, 0
    %s80 = scalar_select %p79, %s78, 0
    %s81 = sadd.s32 %s39, %s35
    %p82 = scmp.lt.s32.totalorder %s81, 0
    %s83 = scalar_select %p82, %s81, 0
    %s84 = ssub.s32 %s24, %s43
    %s85 = ssub.s32 %s80, %s83
    %s86 = sor.u32 %s84, %s85
    %p87 = scmp.eq.s32.totalorder %s86, 0
    %s89 = sadd.s32 %s88, 1
    %s90 = scalar_select %p87, %s88, %s89
    %p93 = pneg %p87
    %p94 = scmp.eq.s32.totalorder %s17, 1
    %p95 = por %p93, %p94
    %p96 = scmp.ne.s32.totalorder %s88, %s91
    %p97 = scmp.eq.s32.totalorder %s17, 0
    %p98 = por %p96, %p97
    %p99 = scmp.ne.s32.totalorder %s88, %s91
    %p100 = scmp.eq.s32.totalorder %s22, 1
    %p101 = por %p99, %p100
    %p102 = scmp.ne.s32.totalorder %s91, %s92
    %p103 = scmp.eq.s32.totalorder %s22, 0
    %p104 = por %p102, %p103
    %p105 = scmp.ne.s32.totalorder %s91, %s92
    %p106 = scmp.eq.s32.totalorder %s23, 1
    %p107 = por %p105, %p106
    %p109 = scmp.ne.s32.totalorder %s92, %s108
    %p110 = scmp.eq.s32.totalorder %s23, 0
    %p111 = por %p109, %p110
    %s112 = ssub.s32 %s24, %s43
    %s113 = ssub.s32 %s25, %s39
    %s114 = sor.u32 %s112, %s113
    %p115 = scmp.eq.s32.totalorder %s114, 0
    %s117 = sadd.s32 %s116, 1
    %s118 = scalar_select %p115, %s116, %s117
    %p121 = pneg %p115
    %p122 = scmp.eq.s32.totalorder %s17, 1
    %p123 = por %p121, %p122
    %p124 = scmp.ne.s32.totalorder %s116, %s119
    %p125 = scmp.eq.s32.totalorder %s17, 0
    %p126 = por %p124, %p125
    %p127 = scmp.ne.s32.totalorder %s116, %s119
    %p128 = scmp.eq.s32.totalorder %s22, 1
    %p129 = por %p127, %p128
    %p130 = scmp.ne.s32.totalorder %s119, %s120
    %p131 = scmp.eq.s32.totalorder %s22, 0
    %p132 = por %p130, %p131
    %p133 = scmp.ne.s32.totalorder %s119, %s120
    %p134 = scmp.eq.s32.totalorder %s23, 1
    %p135 = por %p133, %p134
    %p137 = scmp.ne.s32.totalorder %s120, %s136
    %p138 = scmp.eq.s32.totalorder %s23, 0
    %p139 = por %p137, %p138
    %s140 = ssub.s32 %s24, %s43
    %s141 = ssub.s32 %s25, %s39
    %s142 = sor.u32 %s140, %s141
    %p143 = scmp.eq.s32.totalorder %s142, 0
    %s145 = sadd.s32 %s144, 1
    %s146 = scalar_select %p143, %s144, %s145
    %p149 = pneg %p143
    %p150 = scmp.eq.s32.totalorder %s17, 1
    %p151 = por %p149, %p150
    %p152 = scmp.ne.s32.totalorder %s144, %s147
    %p153 = scmp.eq.s32.totalorder %s17, 0
    %p154 = por %p152, %p153
    %p155 = scmp.ne.s32.totalorder %s144, %s147
    %p156 = scmp.eq.s32.totalorder %s22, 1
    %p157 = por %p155, %p156
    %p158 = scmp.ne.s32.totalorder %s147, %s148
    %p159 = scmp.eq.s32.totalorder %s22, 0
    %p160 = por %p158, %p159
    %p161 = scmp.ne.s32.totalorder %s147, %s148
    %p162 = scmp.eq.s32.totalorder %s23, 1
    %p163 = por %p161, %p162
    %p165 = scmp.ne.s32.totalorder %s148, %s164
    %p166 = scmp.eq.s32.totalorder %s23, 0
    %p167 = por %p165, %p166
    %p168 = scmp.le.s32.totalorder 1, %s17
    %p169 = scmp.lt.s32.totalorder %s17, 3
    %p170 = pnand %p168, %p169
    %p171 = pneg %p170
    // Predicated region
    $region9: #{cross_entropy_loss.1} parent=5 // pred_check
      _
    $region10: #{cross_entropy_loss.1} parent=5 // pred_check_branch
      %173 = sbr.rel (%p170) target = $region12
    $region11: #{cross_entropy_loss.1} parent=5 // pred_region
      %s174 = ssub.s32 %s17, 1
    $region12: #{cross_entropy_loss.1} parent=5 // pred_fallthru
      _
    %p175 = scmp.lt.s32.totalorder %s17, 2
    // Predicated region
    $region13: #{cross_entropy_loss.1} parent=5 // pred_check
      %p176 = pneg %p175
    $region14: #{cross_entropy_loss.1} parent=5 // pred_check_branch
      %178 = sbr.rel (%p176) target = $region16
    $region15: #{cross_entropy_loss.1} parent=5 // pred_region
      // Predicated region
      $region17: #{cross_entropy_loss.1} parent=15 // pred_check
        %p179 = pneg %p64
      $region18: #{cross_entropy_loss.1} parent=15 // pred_check_branch
        %181 = sbr.rel (%p179) target = $region20
      $region19: #{cross_entropy_loss.1} parent=15 // pred_region
        %s182 = sadd.s32 %s25, %s26
        %p183 = scmp.lt.s32.totalorder %s182, 0
        %s184 = scalar_select %p183, %s182, 0
        %p185 = scmp.lt.s32.totalorder %s24, 1
        %s186 = scalar_select %p185, %s24, 1
        %p187 = scmp.lt.s32.totalorder %s184, 0
        %s188 = scalar_select %p187, %s184, 0
        %s189 = smul.addr %s186, 8
        %s190 = sadd.s32 %s188, %s189
        %s191 = smul.addr %s190, 2
        %s192 = scalar_lea.vmem %s1, %s191
        %s193 = sadd.s32 %s25, %s26
        %p194 = scmp.lt.s32.totalorder %s193, 0
        %s195 = scalar_select %p194, %s193, 0
      $region20: #{cross_entropy_loss.1} parent=15 // pred_fallthru
        _
      // Predicated region
      $region21: #{cross_entropy_loss.1} parent=15 // pred_check
        %p196 = pneg %p98
      $region22: #{cross_entropy_loss.1} parent=15 // pred_check_branch
        %198 = sbr.rel (%p196) target = $region24
      $region23: #{cross_entropy_loss.1} parent=15 // pred_region
        %s199 = sadd.s32 %s25, %s26
        %p200 = scmp.lt.s32.totalorder %s199, 0
        %s201 = scalar_select %p200, %s199, 0
        %p202 = scmp.lt.s32.totalorder %s24, 1
        %s203 = scalar_select %p202, %s24, 1
        %p204 = scmp.lt.s32.totalorder %s201, 0
        %s205 = scalar_select %p204, %s201, 0
        %s206 = sadd.s32 %s205, %s203
        %s207 = smul.addr %s206, 2
        %s208 = scalar_lea.vmem %s2, %s207
        %s209 = sadd.s32 %s25, %s26
        %p210 = scmp.lt.s32.totalorder %s209, 0
        %s211 = scalar_select %p210, %s209, 0
      $region24: #{cross_entropy_loss.1} parent=15 // pred_fallthru
        _
    $region16: #{cross_entropy_loss.1} parent=5 // pred_fallthru
      _
    %p212 = scmp.le.s32.totalorder 1, %s17
    %p213 = scmp.lt.s32.totalorder %s17, 3
    %p214 = pnand %p212, %p213
    %p215 = pneg %p214
    // Predicated region
    $region25: #{cross_entropy_loss.1} parent=5 // pred_check
      _
    $region26: #{cross_entropy_loss.1} parent=5 // pred_check_branch
      %217 = sbr.rel (%p214) target = $region28
    $region27: #{cross_entropy_loss.1} parent=5 // pred_region
      %s218 = ssub.s32 %s17, 1
      %s219 = sadd.s32 %s28, %s29
      %p220 = scmp.lt.s32.totalorder %s219, 0
      %s221 = scalar_select %p220, %s219, 0
      %p222 = scmp.lt.s32.totalorder %s27, 1
      %s223 = scalar_select %p222, %s27, 1
      %p224 = scmp.lt.s32.totalorder %s221, 0
      %s225 = scalar_select %p224, %s221, 0
      %s226 = smul.addr %s223, 8
      %s227 = sadd.s32 %s225, %s226
      %s228 = smul.addr %s227, 2
      %s229 = scalar_lea.vmem %s1, %s228
      %p230 = pneg %p70
      %p231 = pneg %p67
      %s232 = sadd.s32 %s28, %s29
      %p233 = scmp.lt.s32.totalorder %s232, 0
      %s234 = scalar_select %p233, %s232, 0
      %p235 = scmp.lt.s32.totalorder %s27, 1
      %s236 = scalar_select %p235, %s27, 1
      %p237 = scmp.lt.s32.totalorder %s234, 0
      %s238 = scalar_select %p237, %s234, 0
      %s239 = sadd.s32 %s238, %s236
      %s240 = smul.addr %s239, 2
      %s241 = scalar_lea.vmem %s2, %s240
      %p242 = pneg %p104
      %p243 = pneg %p101
      %p244 = pneg %p132
      %p245 = pneg %p129
      %p246 = scmp.lt.s32.totalorder %s27, 1
      %s247 = scalar_select %p246, %s27, 1
      %p248 = scmp.lt.s32.totalorder %s28, 0
      %s249 = scalar_select %p248, %s28, 0
      %s250 = sadd.s32 %s249, %s247
      %s251 = scalar_lea.vmem %s3, %s250
      %p252 = pneg %p160
      %p253 = pneg %p157
      %p254 = scmp.lt.s32.totalorder %s27, 1
      %s255 = scalar_select %p254, %s27, 1
      %p256 = scmp.lt.s32.totalorder %s28, 0
      %s257 = scalar_select %p256, %s28, 0
      %s258 = sadd.s32 %s257, %s255
      %s259 = scalar_lea.vmem %s4, %s258
      %s260 = sadd.s32 %s28, %s29
      %p261 = scmp.lt.s32.totalorder %s260, 0
      %s262 = scalar_select %p261, %s260, 0
      %p263 = scmp.lt.s32.totalorder %s27, 1
      %s264 = scalar_select %p263, %s27, 1
      %p265 = scmp.lt.s32.totalorder %s262, 0
      %s266 = scalar_select %p265, %s262, 0
      %s267 = smul.addr %s264, 8
      %s268 = sadd.s32 %s266, %s267
      %s269 = smul.addr %s268, 2
      %s270 = scalar_lea.vmem %s1, %s269
      %s271 = sadd.s32 %s28, %s29
      %p272 = scmp.lt.s32.totalorder %s271, 0
      %s273 = scalar_select %p272, %s271, 0
      %s274 = sadd.s32 %s28, %s29
      %p275 = scmp.lt.s32.totalorder %s274, 0
      %s276 = scalar_select %p275, %s274, 0
      %p277 = scmp.lt.s32.totalorder %s27, 1
      %s278 = scalar_select %p277, %s27, 1
      %p279 = scmp.lt.s32.totalorder %s276, 0
      %s280 = scalar_select %p279, %s276, 0
      %s281 = sadd.s32 %s280, %s278
      %s282 = smul.addr %s281, 2
      %s283 = scalar_lea.vmem %s2, %s282
      %s284 = sadd.s32 %s28, %s29
      %p285 = scmp.lt.s32.totalorder %s284, 0
      %s286 = scalar_select %p285, %s284, 0
      %p287 = scmp.lt.s32.totalorder %s27, 1
      %s288 = scalar_select %p287, %s27, 1
      %p289 = scmp.lt.s32.totalorder %s28, 0
      %s290 = scalar_select %p289, %s28, 0
      %s291 = sadd.s32 %s290, %s288
      %s292 = scalar_lea.vmem %s3, %s291
      %p293 = scmp.lt.s32.totalorder %s27, 1
      %s294 = scalar_select %p293, %s27, 1
      %p295 = scmp.lt.s32.totalorder %s28, 0
      %s296 = scalar_select %p295, %s28, 0
      %s297 = sadd.s32 %s296, %s294
      %s298 = scalar_lea.vmem %s4, %s297
      %p299 = scmp.eq.s32.totalorder %s29, 0
      // Predicated region
      $region29: #{cross_entropy_loss.1} parent=27 // pred_check
        %p300 = pneg %p299
      $region30: #{cross_entropy_loss.1} parent=27 // pred_check_branch
        %302 = sbr.rel (%p300) target = $region32
      $region31: #{cross_entropy_loss.1} parent=27 // pred_region
        %303 = vst [vmem:[#allocation2] sm:$0x3] 0.0
        %304 = vst [vmem:[#allocation3] sm:$0x3] 0.0
      $region32: #{cross_entropy_loss.1} parent=27 // pred_fallthru
        _
      %v305 = vld [vmem:[%s283] sm:$0x3]
      %v306 = vld [vmem:[%s270] sm:$0x3]
      %vm307 = vcmp.eq.s32.totalorder %v305, 0
      %v308 = vsel %vm307, %v306, 0.0
      %s309 = sld [smem:[#allocation5]]
      %v310 = vstv %s309
      %v311 = vsel %vm307, %v310, 0.0
      %s312 = scalar_lea.vmem %s270, 2
      %v313 = vld [vmem:[%s312] sm:$0x3]
      %vm314 = vcmp.eq.s32.totalorder %v305, 1
      %v315 = vmax.f32 %v306, %v313
      %v316 = vsel %vm314, %v313, %v308
      %s317 = sld [smem:[#allocation5 + $0x1]]
      %v318 = vstv %s317
      %v319 = vsel %vm314, %v318, %v311
      %s320 = scalar_lea.vmem %s270, 4
      %v321 = vld [vmem:[%s320] sm:$0x3]
      %vm322 = vcmp.eq.s32.totalorder %v305, 2
      %v323 = vmax.f32 %v315, %v321
      %v324 = vsel %vm322, %v321, %v316
      %s325 = sld [smem:[#allocation5 + $0x2]]
      %v326 = vstv %s325
      %v327 = vsel %vm322, %v326, %v319
      %s328 = scalar_lea.vmem %s270, 6
      %v329 = vld [vmem:[%s328] sm:$0x3]
      %vm330 = vcmp.eq.s32.totalorder %v305, 3
      %v331 = vmax.f32 %v323, %v329
      %v332 = vsel %vm330, %v329, %v324
      %s333 = sld [smem:[#allocation5 + $0x3]]
      %v334 = vstv %s333
      %v335 = vsel %vm330, %v334, %v327
      %s336 = scalar_lea.vmem %s270, 8
      %v337 = vld [vmem:[%s336] sm:$0x3]
      %vm338 = vcmp.eq.s32.totalorder %v305, 4
      %v339 = vmax.f32 %v331, %v337
      %v340 = vsel %vm338, %v337, %v332
      %s341 = sld [smem:[#allocation5 + $0x4]]
      %v342 = vstv %s341
      %v343 = vsel %vm338, %v342, %v335
      %s344 = scalar_lea.vmem %s270, 10
      %v345 = vld [vmem:[%s344] sm:$0x3]
      %vm346 = vcmp.eq.s32.totalorder %v305, 5
      %v347 = vmax.f32 %v339, %v345
      %v348 = vsel %vm346, %v345, %v340
      %s349 = sld [smem:[#allocation5 + $0x5]]
      %v350 = vstv %s349
      %v351 = vsel %vm346, %v350, %v343
      %s352 = scalar_lea.vmem %s270, 12
      %v353 = vld [vmem:[%s352] sm:$0x3]
      %vm354 = vcmp.eq.s32.totalorder %v305, 6
      %v355 = vmax.f32 %v347, %v353
      %v356 = vsel %vm354, %v353, %v348
      %s357 = sld [smem:[#allocation5 + $0x6]]
      %v358 = vstv %s357
      %v359 = vsel %vm354, %v358, %v351
      %s360 = scalar_lea.vmem %s270, 14
      %v361 = vld [vmem:[%s360] sm:$0x3]
      %vm362 = vcmp.eq.s32.totalorder %v305, 7
      %v363 = vmax.f32 %v355, %v361
      %v364 = vsel %vm362, %v361, %v356
      %s365 = sld [smem:[#allocation5 + $0x7]]
      %v366 = vstv %s365
      %v367 = vsel %vm362, %v366, %v359
      %v368 = vsub.f32 %v306, %v363
      %v369 = vmul.f32 %v368, 1.442695
      %v370 = vpow.pop %v369
      %v371 = vsub.f32 %v313, %v363
      %v372 = vmul.f32 %v371, 1.442695
      %v373 = vpow.pop %v372
      %v374 = vadd.f32 %v370, %v373
      %v375 = vsub.f32 %v321, %v363
      %v376 = vmul.f32 %v375, 1.442695
      %v377 = vpow.pop %v376
      %v378 = vadd.f32 %v374, %v377
      %v379 = vsub.f32 %v329, %v363
      %v380 = vmul.f32 %v379, 1.442695
      %v381 = vpow.pop %v380
      %v382 = vadd.f32 %v378, %v381
      %v383 = vsub.f32 %v337, %v363
      %v384 = vmul.f32 %v383, 1.442695
      %v385 = vpow.pop %v384
      %v386 = vadd.f32 %v382, %v385
      %v387 = vsub.f32 %v345, %v363
      %v388 = vmul.f32 %v387, 1.442695
      %v389 = vpow.pop %v388
      %v390 = vadd.f32 %v386, %v389
      %v391 = vsub.f32 %v353, %v363
      %v392 = vmul.f32 %v391, 1.442695
      %v393 = vpow.pop %v392
      %v394 = vadd.f32 %v390, %v393
      %v395 = vsub.f32 %v361, %v363
      %v396 = vmul.f32 %v395, 1.442695
      %v397 = vpow.pop %v396
      %v398 = vadd.f32 %v394, %v397
      %v399 = vlog2.pop %v398
      %v400 = vmul.f32 %v399, 0.6931472
      %v401 = vadd.f32 %v363, %v400
      %v402 = vsub.f32 %v401, %v364
      %v403 = vmul.f32 %v367, %v402
      %v404 = vld [vmem:[#allocation2] sm:$0x3]
      %v405 = vadd.f32 %v404, %v403
      %406 = vst [vmem:[#allocation2] sm:$0x3] %v405
      %v407 = vld [vmem:[#allocation3] sm:$0x3]
      %v408 = vadd.f32 %v407, %v367
      %409 = vst [vmem:[#allocation3] sm:$0x3] %v408
      // Predicated region
      $region33: #{cross_entropy_loss.1} parent=27 // pred_check
        %p410 = pneg %p299
      $region34: #{cross_entropy_loss.1} parent=27 // pred_check_branch
        %412 = sbr.rel (%p410) target = $region36
      $region35: #{cross_entropy_loss.1} parent=27 // pred_region
        %v413 = vld [vmem:[#allocation2] sm:$0x3]
        %vm414 = vcmask 1041408
        %v415 = vsel %vm414, %v413, 0.0
        %v416 = vrot.slane %v415, 4
        %v417 = vadd.f32 %v415, %v416
        %v418 = vrot.slane %v417, 2
        %v419 = vadd.f32 %v417, %v418
        %v420 = vrot.slane %v419, 1
        %v421 = vadd.f32 %v419, %v420
        %422 = vst [vmem:[%s292] sm:$0x1] %v421
        %v423 = vld [vmem:[#allocation3] sm:$0x3]
        %v424 = vsel %vm414, %v423, 0.0
        %v425 = vrot.slane %v424, 4
        %v426 = vadd.f32 %v424, %v425
        %v427 = vrot.slane %v426, 2
        %v428 = vadd.f32 %v426, %v427
        %v429 = vrot.slane %v428, 1
        %v430 = vadd.f32 %v428, %v429
        %431 = vst [vmem:[%s298] sm:$0x1] %v430
      $region36: #{cross_entropy_loss.1} parent=27 // pred_fallthru
        _
      %p432 = scmp.lt.s32.totalorder %s27, 1
      %s433 = scalar_select %p432, %s27, 1
      %p434 = scmp.lt.s32.totalorder %s28, 0
      %s435 = scalar_select %p434, %s28, 0
      %s436 = sadd.s32 %s435, %s433
      %s437 = scalar_lea.vmem %s3, %s436
      %p438 = scmp.lt.s32.totalorder %s27, 1
      %s439 = scalar_select %p438, %s27, 1
      %p440 = scmp.lt.s32.totalorder %s28, 0
      %s441 = scalar_select %p440, %s28, 0
      %s442 = sadd.s32 %s441, %s439
      %s443 = scalar_lea.vmem %s4, %s442
      // Predicated region
      $region37: #{cross_entropy_loss.1} parent=27 // pred_check
        %p444 = pneg %p129
      $region38: #{cross_entropy_loss.1} parent=27 // pred_check_branch
        %446 = sbr.rel (%p444) target = $region40
      $region39: #{cross_entropy_loss.1} parent=27 // pred_region
        _
      $region40: #{cross_entropy_loss.1} parent=27 // pred_fallthru
        _
      // Predicated region
      $region41: #{cross_entropy_loss.1} parent=27 // pred_check
        %p447 = pneg %p157
      $region42: #{cross_entropy_loss.1} parent=27 // pred_check_branch
        %449 = sbr.rel (%p447) target = $region44
      $region43: #{cross_entropy_loss.1} parent=27 // pred_region
        _
      $region44: #{cross_entropy_loss.1} parent=27 // pred_fallthru
        _
    $region28: #{cross_entropy_loss.1} parent=5 // pred_fallthru
      _
    %p450 = scmp.le.s32.totalorder 2, %s17
    // Predicated region
    $region45: #{cross_entropy_loss.1} parent=5 // pred_check
      %p451 = pneg %p450
    $region46: #{cross_entropy_loss.1} parent=5 // pred_check_branch
      %453 = sbr.rel (%p451) target = $region48
    $region47: #{cross_entropy_loss.1} parent=5 // pred_region
      %s454 = ssub.s32 %s17, 2
      // Predicated region
      $region49: #{cross_entropy_loss.1} parent=47 // pred_check
        %p455 = pneg %p135
      $region50: #{cross_entropy_loss.1} parent=47 // pred_check_branch
        %457 = sbr.rel (%p455) target = $region52
      $region51: #{cross_entropy_loss.1} parent=47 // pred_region
        %p458 = scmp.lt.s32.totalorder %s30, 1
        %s459 = scalar_select %p458, %s30, 1
        %p460 = scmp.lt.s32.totalorder %s31, 0
        %s461 = scalar_select %p460, %s31, 0
        %s462 = sadd.s32 %s461, %s459
        %s463 = scalar_lea.vmem %s3, %s462
      $region52: #{cross_entropy_loss.1} parent=47 // pred_fallthru
        _
      // Predicated region
      $region53: #{cross_entropy_loss.1} parent=47 // pred_check
        %p464 = pneg %p163
      $region54: #{cross_entropy_loss.1} parent=47 // pred_check_branch
        %466 = sbr.rel (%p464) target = $region56
      $region55: #{cross_entropy_loss.1} parent=47 // pred_region
        %p467 = scmp.lt.s32.totalorder %s30, 1
        %s468 = scalar_select %p467, %s30, 1
        %p469 = scmp.lt.s32.totalorder %s31, 0
        %s470 = scalar_select %p469, %s31, 0
        %s471 = sadd.s32 %s470, %s468
        %s472 = scalar_lea.vmem %s4, %s471
      $region56: #{cross_entropy_loss.1} parent=47 // pred_fallthru
        _
    $region48: #{cross_entropy_loss.1} parent=5 // pred_fallthru
      _
  $region6: #{cross_entropy_loss.1} parent=0 // loop_footer
    %s21 = sadd.s32 1, %s17
  $region7: #{cross_entropy_loss.1} parent=0 // loop_footer_branch
    %16 = sbr.rel target = $region3
  $region8: #{cross_entropy_loss.1} parent=0 // loop_exit
    _

</llo_original>
